<compile_context>
chip_gen: v7x
topology: tpu7x:2x2x1
jax: 0.10.0
libtpu: 0.0.40
codegen_flags: <defaults>
</compile_context>

<pallas_src>
import functools

import numpy as np
import jax
import jax.numpy as jnp
from jax import lax
from jax.experimental import pallas as pl
from jax.experimental.pallas import tpu as pltpu

BN_EPS = 1e-5
NUM_OPS = 6
KMAX = 5          # largest conv kernel (conv_5)


def _mixed_op_kernel(mask_ref, x_ref, aux_ref, wb_ref, o_ref, imc_ref, *, conv_dtype):
  c, w = x_ref.shape                 # lane-dense working layout: (C, N*L)
  inv_count = 1.0 / float(w)

  # Precomputed (1, W) f32 helper rows (built in the wrapper):
  m_l1 = aux_ref[0:1, :]             # 1.0 where column-1 stays inside the same sample
  m_r1 = aux_ref[1:2, :]             # 1.0 where column+1 stays inside the same sample
  m_l2 = aux_ref[2:3, :]             # 1.0 where column-2 stays inside the same sample
  m_r2 = aux_ref[3:4, :]             # 1.0 where column+2 stays inside the same sample
  inv_cnt = aux_ref[4:5, :]          # avg-pool 1/count (count_include_pad=False)

  def roll_cols(v, delta):
    # t[:, j] = v[:, j + delta] (cyclic); boundary columns are masked by the caller.
    return pltpu.roll(v, shift=(-delta) % w, axis=1)

  def bn(v):
    # BatchNorm1d(C, affine=False), training-mode batch stats, two-pass (no E[x^2]
    # cancellation), fused into the masked accumulation.
    mean = jnp.sum(v, axis=1, keepdims=True) * inv_count
    d = v - mean
    var = jnp.sum(d * d, axis=1, keepdims=True) * inv_count
    return d * lax.rsqrt(var + BN_EPS)

  # Accumulate masked ops directly into the (lane-dense) output slab.
  o_ref[...] = jnp.zeros_like(o_ref)

  # ---- op 1: max_pool_3 + BN (implicit -inf padding) -------------------------
  @pl.when(mask_ref[1] != 0)
  def _():
    xv = x_ref[...]
    neg = jnp.float32(-jnp.inf)
    left = jnp.where(m_l1 > 0, roll_cols(xv, -1), neg)
    right = jnp.where(m_r1 > 0, roll_cols(xv, +1), neg)
    o_ref[...] += bn(jnp.maximum(jnp.maximum(left, xv), right))

  # ---- op 2: avg_pool_3 (count_include_pad=False) + BN ------------------------
  @pl.when(mask_ref[2] != 0)
  def _():
    xv = x_ref[...]
    left = roll_cols(xv, -1) * m_l1
    right = roll_cols(xv, +1) * m_r1
    o_ref[...] += bn((left + xv + right) * inv_cnt)

  # ---- op 3: skip_connect (identity, stride == 1) -----------------------------
  @pl.when(mask_ref[3] != 0)
  def _():
    o_ref[...] += x_ref[...]

  # ---- ops 4/5: ReLU -> Conv1d -> BN via shared im2col + one MXU matmul -------
  conv3_on = mask_ref[4] != 0
  conv5_on = mask_ref[5] != 0

  @pl.when(jnp.logical_or(conv3_on, conv5_on))
  def _():
    # ReLU and the conv_dtype cast are done exactly once; the 5-tap im2col slab
    # (5C, W) is shared by both conv branches.
    xr = jnp.maximum(x_ref[...], jnp.float32(0.0))
    tap_masks = (m_l2, m_l1, None, m_r1, m_r2)
    for k in range(KMAX):
      d = k - KMAX // 2
      t = xr if d == 0 else roll_cols(xr, d) * tap_masks[k]
      imc_ref[k * c:(k + 1) * c, :] = t.astype(conv_dtype)

  @pl.when(jnp.logical_and(conv3_on, conv5_on))
  def _():
    # Both convs: one (2C, 5C) @ (5C, W) matmul (stacked weights), split + BN.
    y = jnp.dot(wb_ref[...], imc_ref[...], preferred_element_type=jnp.float32)
    o_ref[...] += bn(y[0:c, :]) + bn(y[c:2 * c, :])

  @pl.when(jnp.logical_and(conv3_on, jnp.logical_not(conv5_on)))
  def _():
    # conv_3 only: its 5-tap-padded flat weight (zeros at taps 0 and 4).
    y = jnp.dot(wb_ref[0:c, :], imc_ref[...], preferred_element_type=jnp.float32)
    o_ref[...] += bn(y)

  @pl.when(jnp.logical_and(jnp.logical_not(conv3_on), conv5_on))
  def _():
    y = jnp.dot(wb_ref[c:2 * c, :], imc_ref[...], preferred_element_type=jnp.float32)
    o_ref[...] += bn(y)


def _build_aux(n, l):
  """(5, N*L) f32 helper rows: boundary masks for offsets -1/+1/-2/+2 and 1/avg-count."""
  p = np.arange(n * l, dtype=np.int64) % l
  aux = np.zeros((5, n * l), np.float32)
  aux[0] = p >= 1
  aux[1] = p <= l - 2
  aux[2] = p >= 2
  aux[3] = p <= l - 3
  aux[4] = 1.0 / (1.0 + (p >= 1) + (p <= l - 2))
  return aux


def _stack_conv_weights(w3, w5, conv_dtype):
  """(2C, 5C): row block 0 = conv_3 (zero-padded to 5 taps), row block 1 = conv_5."""
  c = w3.shape[-1]
  w3p = jnp.pad(w3.astype(jnp.float32), ((1, 1), (0, 0), (0, 0)))          # (5, C, C)
  wf3 = jnp.transpose(w3p, (1, 0, 2)).reshape(c, KMAX * c)
  wf5 = jnp.transpose(w5.astype(jnp.float32), (1, 0, 2)).reshape(c, KMAX * c)
  return jnp.concatenate([wf3, wf5], axis=0).astype(conv_dtype)


def _vmem_limit_bytes(n, c, l, conv_dtype):
  def rup(v, m):
    return (v + m - 1) // m * m
  w = rup(n * l, 128)
  cs = rup(c, 8)
  item = jnp.dtype(conv_dtype).itemsize
  need = (2 * 4 * cs * w                                   # x slab + output slab (f32)
          + 4 * 8 * w                                      # aux rows
          + item * rup(KMAX * c, 8) * w                    # im2col scratch
          + item * rup(2 * c, 8) * rup(KMAX * c, 128))     # stacked weights
  want = 2 * need + (8 << 20)                              # double-buffer + headroom
  try:
    cap = int(pltpu.get_tpu_info().vmem_capacity_bytes)
  except Exception:
    cap = 64 << 20                                         # v7x per-core physical VMEM
  return int(max(16 << 20, min(want, int(cap * 0.85))))


def mixed_op(x, mask_cnn, w3, w5, conv_dtype=jnp.float32):
  """MixedOp forward (stride == 1).

  x: (N, C, L) f32, mask_cnn: (6,) ints, w3: (3, C, C), w5: (5, C, C).
  conv_dtype=jnp.bfloat16 gives native-bf16 MXU throughput on v5e/v6e/v7x when the
  NAS tolerance allows; the f32 default keeps strict numerics (used by the check).
  """
  n, c, l = x.shape
  w = n * l
  mask = jnp.asarray(mask_cnn, jnp.int32)
  # Lane-dense working layout: (C, N*L). Wrapper-side transpose/reshape is layout
  # plumbing; the kernel itself does only aligned full-slab loads/stores.
  x_t = jnp.transpose(x.astype(jnp.float32), (1, 0, 2)).reshape(c, w)
  aux = jnp.asarray(_build_aux(n, l))
  wb = _stack_conv_weights(w3, w5, conv_dtype)

  kernel = functools.partial(_mixed_op_kernel, conv_dtype=conv_dtype)
  out_flat = pl.pallas_call(
      kernel,
      out_shape=jax.ShapeDtypeStruct((c, w), jnp.float32),
      in_specs=[
          pl.BlockSpec(memory_space=pltpu.MemorySpace.SMEM),   # mask scalars
          pl.BlockSpec(memory_space=pltpu.MemorySpace.VMEM),   # x slab (C, N*L)
          pl.BlockSpec(memory_space=pltpu.MemorySpace.VMEM),   # aux f32 rows
          pl.BlockSpec(memory_space=pltpu.MemorySpace.VMEM),   # stacked conv weights
      ],
      out_specs=pl.BlockSpec(memory_space=pltpu.MemorySpace.VMEM),
      scratch_shapes=[pltpu.VMEM((KMAX * c, w), conv_dtype)],  # shared im2col slab
      compiler_params=pltpu.CompilerParams(
          vmem_limit_bytes=_vmem_limit_bytes(n, c, l, conv_dtype)),
  )(mask, x_t, aux, wb)

  return out_flat.reshape(c, n, l).transpose(1, 0, 2)


# ----------------------------- numpy reference -------------------------------
def _np_bn(y):
  m = y.mean(axis=(0, 2), keepdims=True)
  v = ((y - m) ** 2).mean(axis=(0, 2), keepdims=True)
  return (y - m) / np.sqrt(v + BN_EPS)


def reference(x, mask_cnn, w3, w5):
  x = np.asarray(x, np.float64)
  w3 = np.asarray(w3, np.float64)
  w5 = np.asarray(w5, np.float64)
  n, c, l = x.shape

  xpinf = np.pad(x, ((0, 0), (0, 0), (1, 1)), constant_values=-np.inf)
  mp = np.maximum(np.maximum(xpinf[:, :, 0:l], xpinf[:, :, 1:l + 1]),
                  xpinf[:, :, 2:l + 2])
  xp0 = np.pad(x, ((0, 0), (0, 0), (1, 1)))
  cnt = np.full(l, 3.0); cnt[0] = 2.0; cnt[-1] = 2.0
  ap = (xp0[:, :, 0:l] + xp0[:, :, 1:l + 1] + xp0[:, :, 2:l + 2]) / cnt

  def conv(wk, ksz):
    xr = np.pad(np.maximum(x, 0.0), ((0, 0), (0, 0), (ksz // 2, ksz // 2)))
    out = np.zeros((n, c, l))
    for b in range(n):
      for k in range(ksz):
        out[b] += wk[k] @ xr[b, :, k:k + l]
    return out

  ops = [np.zeros_like(x), _np_bn(mp), _np_bn(ap), x,
         _np_bn(conv(w3, 3)), _np_bn(conv(w5, 5))]
  result = np.zeros_like(x)
  for i in np.nonzero(np.asarray(mask_cnn))[0]:
    result += ops[int(i)]
  return result


if __name__ == "__main__":
  N, C, L = 2, 4, 16
  key = jax.random.PRNGKey(0)
  k1, k2, k3 = jax.random.split(key, 3)
  x = jax.random.normal(k1, (N, C, L), jnp.float32)
  w3 = jax.random.normal(k2, (3, C, C), jnp.float32) * (1.0 / np.sqrt(3 * C))
  w5 = jax.random.normal(k3, (5, C, C), jnp.float32) * (1.0 / np.sqrt(5 * C))

  run = jax.jit(mixed_op)

  masks = [
      np.array([0, 1, 1, 1, 1, 1], dtype=np.int32),   # all real ops enabled
      np.array([0, 1, 0, 1, 1, 1], dtype=np.int32),   # typical sampled subset
      np.array([0, 0, 0, 1, 0, 0], dtype=np.int32),   # skip only
      np.array([0, 0, 0, 0, 1, 0], dtype=np.int32),   # conv_3 only
      np.array([0, 0, 0, 0, 0, 1], dtype=np.int32),   # conv_5 only
      np.array([0, 1, 1, 0, 0, 0], dtype=np.int32),   # pools only
      np.array([0, 0, 0, 0, 0, 0], dtype=np.int32),   # all masked -> zeros
  ]
  for mask_cnn in masks:
    out = jax.block_until_ready(run(x, jnp.asarray(mask_cnn), w3, w5))
    ref = reference(np.asarray(x), mask_cnn, np.asarray(w3), np.asarray(w5))
    np.testing.assert_allclose(np.asarray(out), ref, rtol=1e-4, atol=1e-4)

  print("KERNEL_OK")
</pallas_src>

<mosaic_0001>
module attributes {stable_mosaic.version = 11 : i64} {
  func.func @_mixed_op_kernel(%arg0: memref<6xi32, #tpu.memory_space<smem>>, %arg1: memref<4x32xf32, #tpu.memory_space<vmem>>, %arg2: memref<5x32xf32, #tpu.memory_space<vmem>>, %arg3: memref<8x20xf32, #tpu.memory_space<vmem>>, %arg4: memref<4x32xf32, #tpu.memory_space<vmem>>, %arg5: memref<20x32xf32, #tpu.memory_space<vmem>>) attributes {dimension_semantics = [], scalar_prefetch = 0 : i64, scratch_operands = 1 : i64, tpu.core_type = #tpu.core_type<tc>} {
    %c0 = arith.constant 0 : index
    %c0_0 = arith.constant 0 : index
    %0 = vector.load %arg2[%c0, %c0_0] : memref<5x32xf32, #tpu.memory_space<vmem>>, vector<1x32xf32>
    %c1 = arith.constant 1 : index
    %c0_1 = arith.constant 0 : index
    %1 = vector.load %arg2[%c1, %c0_1] : memref<5x32xf32, #tpu.memory_space<vmem>>, vector<1x32xf32>
    %c2 = arith.constant 2 : index
    %c0_2 = arith.constant 0 : index
    %2 = vector.load %arg2[%c2, %c0_2] : memref<5x32xf32, #tpu.memory_space<vmem>>, vector<1x32xf32>
    %c3 = arith.constant 3 : index
    %c0_3 = arith.constant 0 : index
    %3 = vector.load %arg2[%c3, %c0_3] : memref<5x32xf32, #tpu.memory_space<vmem>>, vector<1x32xf32>
    %c4 = arith.constant 4 : index
    %c0_4 = arith.constant 0 : index
    %4 = vector.load %arg2[%c4, %c0_4] : memref<5x32xf32, #tpu.memory_space<vmem>>, vector<1x32xf32>
    %cst = arith.constant 0.000000e+00 : f32
    %5 = vector.broadcast %cst : f32 to vector<4x32xf32>
    %c0_5 = arith.constant 0 : index
    %c0_6 = arith.constant 0 : index
    %6 = vector.load %arg4[%c0_5, %c0_6] : memref<4x32xf32, #tpu.memory_space<vmem>>, vector<4x32xf32>
    tpu.vector_store %arg4[%c0_5, %c0_6], %5 {strides = array<i32>} : memref<4x32xf32, #tpu.memory_space<vmem>>, vector<4x32xf32>,
    %c1_7 = arith.constant 1 : index
    %7 = memref.load %arg0[%c1_7] : memref<6xi32, #tpu.memory_space<smem>>
    %c0_i32 = arith.constant 0 : i32
    %8 = arith.cmpi ne, %7, %c0_i32 : i32
    %9 = arith.extui %8 : i1 to i32
    %c0_i32_8 = arith.constant 0 : i32
    %10 = arith.cmpi ne, %9, %c0_i32_8 : i32
    scf.if %10 {
      %c0_23 = arith.constant 0 : index
      %c0_24 = arith.constant 0 : index
      %37 = vector.load %arg1[%c0_23, %c0_24] : memref<4x32xf32, #tpu.memory_space<vmem>>, vector<4x32xf32>
      %cst_25 = arith.constant 0.000000e+00 : f32
      %38 = vector.broadcast %cst_25 : f32 to vector<1x32xf32>
      %39 = arith.cmpf ogt, %0, %38 : vector<1x32xf32>
      %c1_i32 = arith.constant 1 : i32
      %40 = tpu.dynamic_rotate %37 by %c1_i32 dim 1 : vector<4x32xf32>, i32 -> vector<4x32xf32>
      %cst_26 = arith.constant 0xFF800000 : f32
      %41 = vector.shape_cast %39 : vector<1x32xi1> to vector<1x32xi1>
      %42 = vector.broadcast %41 : vector<1x32xi1> to vector<4x32xi1>
      %43 = vector.broadcast %cst_26 : f32 to vector<4x32xf32>
      %44 = arith.select %42, %40, %43 : vector<4x32xi1>, vector<4x32xf32>
      %cst_27 = arith.constant 0.000000e+00 : f32
      %45 = vector.broadcast %cst_27 : f32 to vector<1x32xf32>
      %46 = arith.cmpf ogt, %1, %45 : vector<1x32xf32>
      %c31_i32 = arith.constant 31 : i32
      %47 = tpu.dynamic_rotate %37 by %c31_i32 dim 1 : vector<4x32xf32>, i32 -> vector<4x32xf32>
      %cst_28 = arith.constant 0xFF800000 : f32
      %48 = vector.shape_cast %46 : vector<1x32xi1> to vector<1x32xi1>
      %49 = vector.broadcast %48 : vector<1x32xi1> to vector<4x32xi1>
      %50 = vector.broadcast %cst_28 : f32 to vector<4x32xf32>
      %51 = arith.select %49, %47, %50 : vector<4x32xi1>, vector<4x32xf32>
      %c0_29 = arith.constant 0 : index
      %c0_30 = arith.constant 0 : index
      %52 = vector.load %arg4[%c0_29, %c0_30] : memref<4x32xf32, #tpu.memory_space<vmem>>, vector<4x32xf32>
      %53 = arith.maximumf %44, %37 : vector<4x32xf32>
      %54 = arith.maximumf %53, %51 : vector<4x32xf32>
      %cst_31 = arith.constant dense<0.000000e+00> : vector<4xf32>
      %55 = vector.multi_reduction <add>, %54, %cst_31 [1] : vector<4x32xf32> to vector<4xf32>
      %56 = vector.shape_cast %55 : vector<4xf32> to vector<4x1xf32>
      %cst_32 = arith.constant 3.125000e-02 : f32
      %57 = vector.broadcast %cst_32 : f32 to vector<4x1xf32>
      %58 = arith.mulf %56, %57 : vector<4x1xf32>
      %59 = vector.broadcast %58 : vector<4x1xf32> to vector<4x32xf32>
      %60 = arith.subf %54, %59 : vector<4x32xf32>
      %61 = arith.mulf %60, %60 : vector<4x32xf32>
      %cst_33 = arith.constant dense<0.000000e+00> : vector<4xf32>
      %62 = vector.multi_reduction <add>, %61, %cst_33 [1] : vector<4x32xf32> to vector<4xf32>
      %63 = vector.shape_cast %62 : vector<4xf32> to vector<4x1xf32>
      %cst_34 = arith.constant 3.125000e-02 : f32
      %64 = vector.broadcast %cst_34 : f32 to vector<4x1xf32>
      %65 = arith.mulf %63, %64 : vector<4x1xf32>
      %cst_35 = arith.constant 9.99999974E-6 : f32
      %66 = vector.broadcast %cst_35 : f32 to vector<4x1xf32>
      %67 = arith.addf %65, %66 : vector<4x1xf32>
      %68 = math.rsqrt %67 : vector<4x1xf32>
      %69 = vector.broadcast %68 : vector<4x1xf32> to vector<4x32xf32>
      %70 = arith.mulf %60, %69 : vector<4x32xf32>
      %71 = arith.addf %52, %70 : vector<4x32xf32>
      %c0_36 = arith.constant 0 : index
      %c0_37 = arith.constant 0 : index
      %72 = vector.load %arg4[%c0_36, %c0_37] : memref<4x32xf32, #tpu.memory_space<vmem>>, vector<4x32xf32>
      tpu.vector_store %arg4[%c0_36, %c0_37], %71 {strides = array<i32>} : memref<4x32xf32, #tpu.memory_space<vmem>>, vector<4x32xf32>,
    } else {
    }
    %c2_9 = arith.constant 2 : index
    %11 = memref.load %arg0[%c2_9] : memref<6xi32, #tpu.memory_space<smem>>
    %c0_i32_10 = arith.constant 0 : i32
    %12 = arith.cmpi ne, %11, %c0_i32_10 : i32
    %13 = arith.extui %12 : i1 to i32
    %c0_i32_11 = arith.constant 0 : i32
    %14 = arith.cmpi ne, %13, %c0_i32_11 : i32
    scf.if %14 {
      %c0_23 = arith.constant 0 : index
      %c0_24 = arith.constant 0 : index
      %37 = vector.load %arg1[%c0_23, %c0_24] : memref<4x32xf32, #tpu.memory_space<vmem>>, vector<4x32xf32>
      %c1_i32 = arith.constant 1 : i32
      %38 = tpu.dynamic_rotate %37 by %c1_i32 dim 1 : vector<4x32xf32>, i32 -> vector<4x32xf32>
      %39 = vector.broadcast %0 : vector<1x32xf32> to vector<4x32xf32>
      %40 = arith.mulf %38, %39 : vector<4x32xf32>
      %c31_i32 = arith.constant 31 : i32
      %41 = tpu.dynamic_rotate %37 by %c31_i32 dim 1 : vector<4x32xf32>, i32 -> vector<4x32xf32>
      %42 = vector.broadcast %1 : vector<1x32xf32> to vector<4x32xf32>
      %43 = arith.mulf %41, %42 : vector<4x32xf32>
      %c0_25 = arith.constant 0 : index
      %c0_26 = arith.constant 0 : index
      %44 = vector.load %arg4[%c0_25, %c0_26] : memref<4x32xf32, #tpu.memory_space<vmem>>, vector<4x32xf32>
      %45 = arith.addf %40, %37 : vector<4x32xf32>
      %46 = arith.addf %45, %43 : vector<4x32xf32>
      %47 = vector.broadcast %4 : vector<1x32xf32> to vector<4x32xf32>
      %48 = arith.mulf %46, %47 : vector<4x32xf32>
      %cst_27 = arith.constant dense<0.000000e+00> : vector<4xf32>
      %49 = vector.multi_reduction <add>, %48, %cst_27 [1] : vector<4x32xf32> to vector<4xf32>
      %50 = vector.shape_cast %49 : vector<4xf32> to vector<4x1xf32>
      %cst_28 = arith.constant 3.125000e-02 : f32
      %51 = vector.broadcast %cst_28 : f32 to vector<4x1xf32>
      %52 = arith.mulf %50, %51 : vector<4x1xf32>
      %53 = vector.broadcast %52 : vector<4x1xf32> to vector<4x32xf32>
      %54 = arith.subf %48, %53 : vector<4x32xf32>
      %55 = arith.mulf %54, %54 : vector<4x32xf32>
      %cst_29 = arith.constant dense<0.000000e+00> : vector<4xf32>
      %56 = vector.multi_reduction <add>, %55, %cst_29 [1] : vector<4x32xf32> to vector<4xf32>
      %57 = vector.shape_cast %56 : vector<4xf32> to vector<4x1xf32>
      %cst_30 = arith.constant 3.125000e-02 : f32
      %58 = vector.broadcast %cst_30 : f32 to vector<4x1xf32>
      %59 = arith.mulf %57, %58 : vector<4x1xf32>
      %cst_31 = arith.constant 9.99999974E-6 : f32
      %60 = vector.broadcast %cst_31 : f32 to vector<4x1xf32>
      %61 = arith.addf %59, %60 : vector<4x1xf32>
      %62 = math.rsqrt %61 : vector<4x1xf32>
      %63 = vector.broadcast %62 : vector<4x1xf32> to vector<4x32xf32>
      %64 = arith.mulf %54, %63 : vector<4x32xf32>
      %65 = arith.addf %44, %64 : vector<4x32xf32>
      %c0_32 = arith.constant 0 : index
      %c0_33 = arith.constant 0 : index
      %66 = vector.load %arg4[%c0_32, %c0_33] : memref<4x32xf32, #tpu.memory_space<vmem>>, vector<4x32xf32>
      tpu.vector_store %arg4[%c0_32, %c0_33], %65 {strides = array<i32>} : memref<4x32xf32, #tpu.memory_space<vmem>>, vector<4x32xf32>,
    } else {
    }
    %c3_12 = arith.constant 3 : index
    %15 = memref.load %arg0[%c3_12] : memref<6xi32, #tpu.memory_space<smem>>
    %c0_i32_13 = arith.constant 0 : i32
    %16 = arith.cmpi ne, %15, %c0_i32_13 : i32
    %17 = arith.extui %16 : i1 to i32
    %c0_i32_14 = arith.constant 0 : i32
    %18 = arith.cmpi ne, %17, %c0_i32_14 : i32
    scf.if %18 {
      %c0_23 = arith.constant 0 : index
      %c0_24 = arith.constant 0 : index
      %37 = vector.load %arg4[%c0_23, %c0_24] : memref<4x32xf32, #tpu.memory_space<vmem>>, vector<4x32xf32>
      %c0_25 = arith.constant 0 : index
      %c0_26 = arith.constant 0 : index
      %38 = vector.load %arg1[%c0_25, %c0_26] : memref<4x32xf32, #tpu.memory_space<vmem>>, vector<4x32xf32>
      %39 = arith.addf %37, %38 : vector<4x32xf32>
      %c0_27 = arith.constant 0 : index
      %c0_28 = arith.constant 0 : index
      %40 = vector.load %arg4[%c0_27, %c0_28] : memref<4x32xf32, #tpu.memory_space<vmem>>, vector<4x32xf32>
      tpu.vector_store %arg4[%c0_27, %c0_28], %39 {strides = array<i32>} : memref<4x32xf32, #tpu.memory_space<vmem>>, vector<4x32xf32>,
    } else {
    }
    %c4_15 = arith.constant 4 : index
    %19 = memref.load %arg0[%c4_15] : memref<6xi32, #tpu.memory_space<smem>>
    %c0_i32_16 = arith.constant 0 : i32
    %20 = arith.cmpi ne, %19, %c0_i32_16 : i32
    %c5 = arith.constant 5 : index
    %21 = memref.load %arg0[%c5] : memref<6xi32, #tpu.memory_space<smem>>
    %c0_i32_17 = arith.constant 0 : i32
    %22 = arith.cmpi ne, %21, %c0_i32_17 : i32
    %23 = arith.ori %20, %22 : i1
    %24 = arith.extui %23 : i1 to i32
    %c0_i32_18 = arith.constant 0 : i32
    %25 = arith.cmpi ne, %24, %c0_i32_18 : i32
    scf.if %25 {
      %c0_23 = arith.constant 0 : index
      %c0_24 = arith.constant 0 : index
      %37 = vector.load %arg1[%c0_23, %c0_24] : memref<4x32xf32, #tpu.memory_space<vmem>>, vector<4x32xf32>
      %cst_25 = arith.constant 0.000000e+00 : f32
      %38 = vector.broadcast %cst_25 : f32 to vector<4x32xf32>
      %39 = arith.maximumf %37, %38 : vector<4x32xf32>
      %c2_i32 = arith.constant 2 : i32
      %40 = tpu.dynamic_rotate %39 by %c2_i32 dim 1 : vector<4x32xf32>, i32 -> vector<4x32xf32>
      %41 = vector.broadcast %2 : vector<1x32xf32> to vector<4x32xf32>
      %42 = arith.mulf %40, %41 : vector<4x32xf32>
      %c0_26 = arith.constant 0 : index
      %c0_27 = arith.constant 0 : index
      %43 = vector.load %arg5[%c0_26, %c0_27] : memref<20x32xf32, #tpu.memory_space<vmem>>, vector<4x32xf32>
      tpu.vector_store %arg5[%c0_26, %c0_27], %42 {strides = array<i32>} : memref<20x32xf32, #tpu.memory_space<vmem>>, vector<4x32xf32>,
      %c1_i32 = arith.constant 1 : i32
      %44 = tpu.dynamic_rotate %39 by %c1_i32 dim 1 : vector<4x32xf32>, i32 -> vector<4x32xf32>
      %45 = vector.broadcast %0 : vector<1x32xf32> to vector<4x32xf32>
      %46 = arith.mulf %44, %45 : vector<4x32xf32>
      %c4_28 = arith.constant 4 : index
      %c0_29 = arith.constant 0 : index
      %47 = vector.load %arg5[%c4_28, %c0_29] : memref<20x32xf32, #tpu.memory_space<vmem>>, vector<4x32xf32>
      tpu.vector_store %arg5[%c4_28, %c0_29], %46 {strides = array<i32>} : memref<20x32xf32, #tpu.memory_space<vmem>>, vector<4x32xf32>,
      %c8 = arith.constant 8 : index
      %c0_30 = arith.constant 0 : index
      %48 = vector.load %arg5[%c8, %c0_30] : memref<20x32xf32, #tpu.memory_space<vmem>>, vector<4x32xf32>
      tpu.vector_store %arg5[%c8, %c0_30], %39 {strides = array<i32>} : memref<20x32xf32, #tpu.memory_space<vmem>>, vector<4x32xf32>,
      %c31_i32 = arith.constant 31 : i32
      %49 = tpu.dynamic_rotate %39 by %c31_i32 dim 1 : vector<4x32xf32>, i32 -> vector<4x32xf32>
      %50 = vector.broadcast %1 : vector<1x32xf32> to vector<4x32xf32>
      %51 = arith.mulf %49, %50 : vector<4x32xf32>
      %c12 = arith.constant 12 : index
      %c0_31 = arith.constant 0 : index
      %52 = vector.load %arg5[%c12, %c0_31] : memref<20x32xf32, #tpu.memory_space<vmem>>, vector<4x32xf32>
      tpu.vector_store %arg5[%c12, %c0_31], %51 {strides = array<i32>} : memref<20x32xf32, #tpu.memory_space<vmem>>, vector<4x32xf32>,
      %c30_i32 = arith.constant 30 : i32
      %53 = tpu.dynamic_rotate %39 by %c30_i32 dim 1 : vector<4x32xf32>, i32 -> vector<4x32xf32>
      %54 = vector.broadcast %3 : vector<1x32xf32> to vector<4x32xf32>
      %55 = arith.mulf %53, %54 : vector<4x32xf32>
      %c16 = arith.constant 16 : index
      %c0_32 = arith.constant 0 : index
      %56 = vector.load %arg5[%c16, %c0_32] : memref<20x32xf32, #tpu.memory_space<vmem>>, vector<4x32xf32>
      tpu.vector_store %arg5[%c16, %c0_32], %55 {strides = array<i32>} : memref<20x32xf32, #tpu.memory_space<vmem>>, vector<4x32xf32>,
    } else {
    }
    %26 = arith.andi %20, %22 : i1
    %27 = arith.extui %26 : i1 to i32
    %c0_i32_19 = arith.constant 0 : i32
    %28 = arith.cmpi ne, %27, %c0_i32_19 : i32
    scf.if %28 {
      %c0_23 = arith.constant 0 : index
      %c0_24 = arith.constant 0 : index
      %37 = vector.load %arg3[%c0_23, %c0_24] : memref<8x20xf32, #tpu.memory_space<vmem>>, vector<8x20xf32>
      %c0_25 = arith.constant 0 : index
      %c0_26 = arith.constant 0 : index
      %38 = vector.load %arg5[%c0_25, %c0_26] : memref<20x32xf32, #tpu.memory_space<vmem>>, vector<20x32xf32>
      %cst_27 = arith.constant dense<0.000000e+00> : vector<8x32xf32>
      %39 = tpu.matmul %37, %38, %cst_27 {dimension_numbers = #tpu.dot_dimension_numbers<[1], [0], [0], [1], [0, 0, 1, 1], [], []>} : vector<8x20xf32>, vector<20x32xf32>, vector<8x32xf32> -> vector<8x32xf32>
      %c0_28 = arith.constant 0 : index
      %c0_29 = arith.constant 0 : index
      %40 = vector.load %arg4[%c0_28, %c0_29] : memref<4x32xf32, #tpu.memory_space<vmem>>, vector<4x32xf32>
      %41 = vector.extract_strided_slice %39 {offsets = [0, 0], sizes = [4, 32], strides = [1, 1]} : vector<8x32xf32> to vector<4x32xf32>
      %cst_30 = arith.constant dense<0.000000e+00> : vector<4xf32>
      %42 = vector.multi_reduction <add>, %41, %cst_30 [1] : vector<4x32xf32> to vector<4xf32>
      %43 = vector.shape_cast %42 : vector<4xf32> to vector<4x1xf32>
      %cst_31 = arith.constant 3.125000e-02 : f32
      %44 = vector.broadcast %cst_31 : f32 to vector<4x1xf32>
      %45 = arith.mulf %43, %44 : vector<4x1xf32>
      %46 = vector.broadcast %45 : vector<4x1xf32> to vector<4x32xf32>
      %47 = arith.subf %41, %46 : vector<4x32xf32>
      %48 = arith.mulf %47, %47 : vector<4x32xf32>
      %cst_32 = arith.constant dense<0.000000e+00> : vector<4xf32>
      %49 = vector.multi_reduction <add>, %48, %cst_32 [1] : vector<4x32xf32> to vector<4xf32>
      %50 = vector.shape_cast %49 : vector<4xf32> to vector<4x1xf32>
      %cst_33 = arith.constant 3.125000e-02 : f32
      %51 = vector.broadcast %cst_33 : f32 to vector<4x1xf32>
      %52 = arith.mulf %50, %51 : vector<4x1xf32>
      %cst_34 = arith.constant 9.99999974E-6 : f32
      %53 = vector.broadcast %cst_34 : f32 to vector<4x1xf32>
      %54 = arith.addf %52, %53 : vector<4x1xf32>
      %55 = math.rsqrt %54 : vector<4x1xf32>
      %56 = vector.broadcast %55 : vector<4x1xf32> to vector<4x32xf32>
      %57 = arith.mulf %47, %56 : vector<4x32xf32>
      %58 = vector.extract_strided_slice %39 {offsets = [4, 0], sizes = [4, 32], strides = [1, 1]} : vector<8x32xf32> to vector<4x32xf32>
      %cst_35 = arith.constant dense<0.000000e+00> : vector<4xf32>
      %59 = vector.multi_reduction <add>, %58, %cst_35 [1] : vector<4x32xf32> to vector<4xf32>
      %60 = vector.shape_cast %59 : vector<4xf32> to vector<4x1xf32>
      %cst_36 = arith.constant 3.125000e-02 : f32
      %61 = vector.broadcast %cst_36 : f32 to vector<4x1xf32>
      %62 = arith.mulf %60, %61 : vector<4x1xf32>
      %63 = vector.broadcast %62 : vector<4x1xf32> to vector<4x32xf32>
      %64 = arith.subf %58, %63 : vector<4x32xf32>
      %65 = arith.mulf %64, %64 : vector<4x32xf32>
      %cst_37 = arith.constant dense<0.000000e+00> : vector<4xf32>
      %66 = vector.multi_reduction <add>, %65, %cst_37 [1] : vector<4x32xf32> to vector<4xf32>
      %67 = vector.shape_cast %66 : vector<4xf32> to vector<4x1xf32>
      %cst_38 = arith.constant 3.125000e-02 : f32
      %68 = vector.broadcast %cst_38 : f32 to vector<4x1xf32>
      %69 = arith.mulf %67, %68 : vector<4x1xf32>
      %cst_39 = arith.constant 9.99999974E-6 : f32
      %70 = vector.broadcast %cst_39 : f32 to vector<4x1xf32>
      %71 = arith.addf %69, %70 : vector<4x1xf32>
      %72 = math.rsqrt %71 : vector<4x1xf32>
      %73 = vector.broadcast %72 : vector<4x1xf32> to vector<4x32xf32>
      %74 = arith.mulf %64, %73 : vector<4x32xf32>
      %75 = arith.addf %57, %74 : vector<4x32xf32>
      %76 = arith.addf %40, %75 : vector<4x32xf32>
      %c0_40 = arith.constant 0 : index
      %c0_41 = arith.constant 0 : index
      %77 = vector.load %arg4[%c0_40, %c0_41] : memref<4x32xf32, #tpu.memory_space<vmem>>, vector<4x32xf32>
      tpu.vector_store %arg4[%c0_40, %c0_41], %76 {strides = array<i32>} : memref<4x32xf32, #tpu.memory_space<vmem>>, vector<4x32xf32>,
    } else {
    }
    %true = arith.constant true
    %29 = arith.xori %22, %true : i1
    %30 = arith.andi %20, %29 : i1
    %31 = arith.extui %30 : i1 to i32
    %c0_i32_20 = arith.constant 0 : i32
    %32 = arith.cmpi ne, %31, %c0_i32_20 : i32
    scf.if %32 {
      %c0_23 = arith.constant 0 : index
      %c0_24 = arith.constant 0 : index
      %37 = vector.load %arg3[%c0_23, %c0_24] : memref<8x20xf32, #tpu.memory_space<vmem>>, vector<4x20xf32>
      %c0_25 = arith.constant 0 : index
      %c0_26 = arith.constant 0 : index
      %38 = vector.load %arg5[%c0_25, %c0_26] : memref<20x32xf32, #tpu.memory_space<vmem>>, vector<20x32xf32>
      %cst_27 = arith.constant dense<0.000000e+00> : vector<4x32xf32>
      %39 = tpu.matmul %37, %38, %cst_27 {dimension_numbers = #tpu.dot_dimension_numbers<[1], [0], [0], [1], [0, 0, 1, 1], [], []>} : vector<4x20xf32>, vector<20x32xf32>, vector<4x32xf32> -> vector<4x32xf32>
      %c0_28 = arith.constant 0 : index
      %c0_29 = arith.constant 0 : index
      %40 = vector.load %arg4[%c0_28, %c0_29] : memref<4x32xf32, #tpu.memory_space<vmem>>, vector<4x32xf32>
      %cst_30 = arith.constant dense<0.000000e+00> : vector<4xf32>
      %41 = vector.multi_reduction <add>, %39, %cst_30 [1] : vector<4x32xf32> to vector<4xf32>
      %42 = vector.shape_cast %41 : vector<4xf32> to vector<4x1xf32>
      %cst_31 = arith.constant 3.125000e-02 : f32
      %43 = vector.broadcast %cst_31 : f32 to vector<4x1xf32>
      %44 = arith.mulf %42, %43 : vector<4x1xf32>
      %45 = vector.broadcast %44 : vector<4x1xf32> to vector<4x32xf32>
      %46 = arith.subf %39, %45 : vector<4x32xf32>
      %47 = arith.mulf %46, %46 : vector<4x32xf32>
      %cst_32 = arith.constant dense<0.000000e+00> : vector<4xf32>
      %48 = vector.multi_reduction <add>, %47, %cst_32 [1] : vector<4x32xf32> to vector<4xf32>
      %49 = vector.shape_cast %48 : vector<4xf32> to vector<4x1xf32>
      %cst_33 = arith.constant 3.125000e-02 : f32
      %50 = vector.broadcast %cst_33 : f32 to vector<4x1xf32>
      %51 = arith.mulf %49, %50 : vector<4x1xf32>
      %cst_34 = arith.constant 9.99999974E-6 : f32
      %52 = vector.broadcast %cst_34 : f32 to vector<4x1xf32>
      %53 = arith.addf %51, %52 : vector<4x1xf32>
      %54 = math.rsqrt %53 : vector<4x1xf32>
      %55 = vector.broadcast %54 : vector<4x1xf32> to vector<4x32xf32>
      %56 = arith.mulf %46, %55 : vector<4x32xf32>
      %57 = arith.addf %40, %56 : vector<4x32xf32>
      %c0_35 = arith.constant 0 : index
      %c0_36 = arith.constant 0 : index
      %58 = vector.load %arg4[%c0_35, %c0_36] : memref<4x32xf32, #tpu.memory_space<vmem>>, vector<4x32xf32>
      tpu.vector_store %arg4[%c0_35, %c0_36], %57 {strides = array<i32>} : memref<4x32xf32, #tpu.memory_space<vmem>>, vector<4x32xf32>,
    } else {
    }
    %true_21 = arith.constant true
    %33 = arith.xori %20, %true_21 : i1
    %34 = arith.andi %33, %22 : i1
    %35 = arith.extui %34 : i1 to i32
    %c0_i32_22 = arith.constant 0 : i32
    %36 = arith.cmpi ne, %35, %c0_i32_22 : i32
    scf.if %36 {
      %c4_23 = arith.constant 4 : index
      %c0_24 = arith.constant 0 : index
      %37 = vector.load %arg3[%c4_23, %c0_24] : memref<8x20xf32, #tpu.memory_space<vmem>>, vector<4x20xf32>
      %c0_25 = arith.constant 0 : index
      %c0_26 = arith.constant 0 : index
      %38 = vector.load %arg5[%c0_25, %c0_26] : memref<20x32xf32, #tpu.memory_space<vmem>>, vector<20x32xf32>
      %cst_27 = arith.constant dense<0.000000e+00> : vector<4x32xf32>
      %39 = tpu.matmul %37, %38, %cst_27 {dimension_numbers = #tpu.dot_dimension_numbers<[1], [0], [0], [1], [0, 0, 1, 1], [], []>} : vector<4x20xf32>, vector<20x32xf32>, vector<4x32xf32> -> vector<4x32xf32>
      %c0_28 = arith.constant 0 : index
      %c0_29 = arith.constant 0 : index
      %40 = vector.load %arg4[%c0_28, %c0_29] : memref<4x32xf32, #tpu.memory_space<vmem>>, vector<4x32xf32>
      %cst_30 = arith.constant dense<0.000000e+00> : vector<4xf32>
      %41 = vector.multi_reduction <add>, %39, %cst_30 [1] : vector<4x32xf32> to vector<4xf32>
      %42 = vector.shape_cast %41 : vector<4xf32> to vector<4x1xf32>
      %cst_31 = arith.constant 3.125000e-02 : f32
      %43 = vector.broadcast %cst_31 : f32 to vector<4x1xf32>
      %44 = arith.mulf %42, %43 : vector<4x1xf32>
      %45 = vector.broadcast %44 : vector<4x1xf32> to vector<4x32xf32>
      %46 = arith.subf %39, %45 : vector<4x32xf32>
      %47 = arith.mulf %46, %46 : vector<4x32xf32>
      %cst_32 = arith.constant dense<0.000000e+00> : vector<4xf32>
      %48 = vector.multi_reduction <add>, %47, %cst_32 [1] : vector<4x32xf32> to vector<4xf32>
      %49 = vector.shape_cast %48 : vector<4xf32> to vector<4x1xf32>
      %cst_33 = arith.constant 3.125000e-02 : f32
      %50 = vector.broadcast %cst_33 : f32 to vector<4x1xf32>
      %51 = arith.mulf %49, %50 : vector<4x1xf32>
      %cst_34 = arith.constant 9.99999974E-6 : f32
      %52 = vector.broadcast %cst_34 : f32 to vector<4x1xf32>
      %53 = arith.addf %51, %52 : vector<4x1xf32>
      %54 = math.rsqrt %53 : vector<4x1xf32>
      %55 = vector.broadcast %54 : vector<4x1xf32> to vector<4x32xf32>
      %56 = arith.mulf %46, %55 : vector<4x32xf32>
      %57 = arith.addf %40, %56 : vector<4x32xf32>
      %c0_35 = arith.constant 0 : index
      %c0_36 = arith.constant 0 : index
      %58 = vector.load %arg4[%c0_35, %c0_36] : memref<4x32xf32, #tpu.memory_space<vmem>>, vector<4x32xf32>
      tpu.vector_store %arg4[%c0_35, %c0_36], %57 {strides = array<i32>} : memref<4x32xf32, #tpu.memory_space<vmem>>, vector<4x32xf32>,
    } else {
    }
    return
  }
}

</mosaic_0001>

<llo_original>
// kernel: mixed_op.1
$region0: #{mixed_op.1}
  #allocation0 [shape = 'u32[]', space=smem, size = 0x4, offset = 0x4, fixed_abs, tag = 'smem constant byte address 0x4 - core index']
  #allocation1 [shape = 'u32[144,128]{1,0:T(1,128)}', space=vmem, size = 0x12000, scoped, tag = 'internal scratch']
  #allocation2 [shape = 'f32[20,32]{1,0:T(8,128)}', space=vmem, size = 0x3000, scoped, tag = 'scratch operand']
  %s0 = inlined_call_operand.vmem [shape: s32[6], index: 0, kind: input, shape index: {}]
  %s1 = inlined_call_operand.vmem [shape: f32[4,32], index: 1, kind: input, shape index: {}]
  %s2 = inlined_call_operand.vmem [shape: f32[5,32], index: 2, kind: input, shape index: {}]
  %s3 = inlined_call_operand.vmem [shape: f32[8,20], index: 3, kind: input, shape index: {}]
  %s4 = inlined_call_operand.vmem [shape: f32[4,32], index: 4, kind: output, shape index: {}]
  %s5 = sld [smem:[#allocation0]]
  $region58: #{mixed_op.1} parent=0
    _
  %s7 = ssub.s32 1, %s5
  %s8 = scalar_select 0, %s7, %s5
  $region1: #{mixed_op.1} parent=0
    #allocation3 [shape = 'u8[512]{0}', space=smem, size = 0x200, scoped, tag = 'input window, operand 0, single buffered']
    #allocation4 [shape = 's32[1]{0}', space=sflag, size = 0x4, scoped, tag = 'scoped memory for mixed_op.1']
    %9 = vsyncpa [#allocation4], 0
    // Predicated region
    $region2: #{mixed_op.1} parent=1 // pred_check
      _
    $region3: #{mixed_op.1} parent=1 // pred_check_branch
      %11 = sbr.rel (0) target = $region5
    $region4: #{mixed_op.1} parent=1 // pred_region
      %s13 = ssub.s32 16, 16
      %14 = vsyncadd [#allocation4], %s13
      %s16 = sshll.u32 %s0, 4
      %s17 = int_to_ptr.vmem [resolvable:$true] %s16
      %19 = dma.vmem_to_smem %s17, 16, [#allocation3], [#allocation4]
    $region5: #{mixed_op.1} parent=1 // pred_fallthru
      _
    // Predicated region
    $region6: #{mixed_op.1} parent=1 // pred_check
      _
    $region7: #{mixed_op.1} parent=1 // pred_check_branch
      %21 = sbr.rel (0) target = $region9
    $region8: #{mixed_op.1} parent=1 // pred_region
      _
    $region9: #{mixed_op.1} parent=1 // pred_fallthru
      _
    // Predicated region
    $region10: #{mixed_op.1} parent=1 // pred_check
      _
    $region11: #{mixed_op.1} parent=1 // pred_check_branch
      %23 = sbr.rel (0) target = $region13
    $region12: #{mixed_op.1} parent=1 // pred_region
      _
    $region13: #{mixed_op.1} parent=1 // pred_fallthru
      _
    // Predicated region
    $region14: #{mixed_op.1} parent=1 // pred_check
      _
    $region15: #{mixed_op.1} parent=1 // pred_check_branch
      %25 = sbr.rel (0) target = $region17
    $region16: #{mixed_op.1} parent=1 // pred_region
      _
    $region17: #{mixed_op.1} parent=1 // pred_fallthru
      _
    // Predicated region
    $region18: #{mixed_op.1} parent=1 // pred_check
      _
    $region19: #{mixed_op.1} parent=1 // pred_check_branch
      %27 = sbr.rel (0) target = $region21
    $region20: #{mixed_op.1} parent=1 // pred_region
      %28 = dma.done [#allocation4], 16
    $region21: #{mixed_op.1} parent=1 // pred_fallthru
      _
    %29 = sfence
    %v30 = vld [vmem:[%s2] sm:$0x1]
    %v31 = vld [vmem:[%s2 + $0x1] sm:$0x1]
    %v32 = vld [vmem:[%s2 + $0x2] sm:$0x1]
    %v33 = vld [vmem:[%s2 + $0x3] sm:$0x1]
    %v34 = vld [vmem:[%s2 + $0x4] sm:$0x1]
    %vm35 = vcmask 257024
    %36 = vst.msk [vmem:[%s4] sm:$0xf] %vm35, 0.0
    %s37 = sld [smem:[#allocation3 + $0x1]]
    %p38 = scmp.ne.s32.totalorder %s37, 0
    // Predicated region
    $region22: #{mixed_op.1} parent=1 // pred_check
      %p39 = pneg %p38
    $region23: #{mixed_op.1} parent=1 // pred_check_branch
      %41 = sbr.rel (%p39) target = $region25
    $region24: #{mixed_op.1} parent=1 // pred_region
      %v42 = vld [vmem:[%s1] sm:$0xf]
      %vm43 = vcmp.gt.f32.partialorder %v30, 0.0
      %vm44 = vcmask 1047808
      %45 = vrot.lane.b32.xlu0 %v42, 32
      %v46 = vpop.permute.xlu0 %45
      %v47 = vsel %vm44, %v46, %v42
      %48 = vrot.lane.b32.xlu0 %v47, 32
      %v49 = vpop.permute.xlu0 %48
      %v50 = vsel %vm44, %v49, %v42
      %v51 = vsel %vm43, 1, 0
      %v52 = vlaneseq
      %v53 = vshrl.u32 %v52, 7
      %v54 = vsub.s32 0, %v53
      %v55 = vrot.slane %v51, %v54
      %vm56 = vcmp.eq.s32.totalorder %v55, 1
      %58 = vrot.lane.b32.xlu0 %v50, 97
      %v59 = vpop.permute.xlu0 %58
      %v61 = vsel %vm56, %v59, -inf
      %vm62 = vcmp.gt.f32.partialorder %v31, 0.0
      %v63 = vsel %vm62, 1, 0
      %v64 = vlaneseq
      %v65 = vshrl.u32 %v64, 7
      %v66 = vsub.s32 0, %v65
      %v67 = vrot.slane %v63, %v66
      %vm68 = vcmp.eq.s32.totalorder %v67, 1
      %69 = vrot.lane.b32.xlu0 %v50, 127
      %v70 = vpop.permute.xlu0 %69
      %v72 = vsel %vm68, %v70, -inf
      %v73 = vld [vmem:[%s4] sm:$0xf]
      %v74 = vmax.f32 %v61, %v42
      %v75 = vmax.f32 %v74, %v72
      %v76 = vsel %vm35, %v75, 0.0
      %77 = vadd.xlane.f32.xlu0 %v76
      %v78 = vpop.xlane.xlu0 %77
      %v79 = vmul.f32 %v78, 0.03125
      %v80 = vsub.f32 %v75, %v79
      %v81 = vmul.f32 %v80, %v80
      %v82 = vsel %vm35, %v81, 0.0
      %83 = vadd.xlane.f32.xlu0 %v82
      %v84 = vpop.xlane.xlu0 %83
      %v85 = vmul.f32 %v84, 0.03125
      %v86 = vadd.f32 %v85, 1e-05
      %v87 = vrsqrt.pop %v86
      %v88 = vmul.f32 %v80, %v87
      %v89 = vadd.f32 %v73, %v88
      %90 = vst.msk [vmem:[%s4] sm:$0xf] %vm35, %v89
    $region25: #{mixed_op.1} parent=1 // pred_fallthru
      _
    %s91 = sld [smem:[#allocation3 + $0x2]]
    %p92 = scmp.ne.s32.totalorder %s91, 0
    // Predicated region
    $region26: #{mixed_op.1} parent=1 // pred_check
      %p93 = pneg %p92
    $region27: #{mixed_op.1} parent=1 // pred_check_branch
      %95 = sbr.rel (%p93) target = $region29
    $region28: #{mixed_op.1} parent=1 // pred_region
      %v96 = vld [vmem:[%s1] sm:$0xf]
      %vm97 = vcmask 1047808
      %98 = vrot.lane.b32.xlu0 %v96, 32
      %v99 = vpop.permute.xlu0 %98
      %v100 = vsel %vm97, %v99, %v96
      %101 = vrot.lane.b32.xlu0 %v100, 32
      %v102 = vpop.permute.xlu0 %101
      %v103 = vsel %vm97, %v102, %v96
      %v104 = vlaneseq
      %v105 = vshrl.u32 %v104, 7
      %v106 = vsub.s32 0, %v105
      %v107 = vrot.slane %v30, %v106
      %109 = vrot.lane.b32.xlu0 %v107, 31
      %v110 = vpop.permute.xlu0 %109
      %v112 = vmul.f32 %v103, %v110
      %v113 = vlaneseq
      %v114 = vshrl.u32 %v113, 7
      %v115 = vsub.s32 0, %v114
      %v116 = vrot.slane %v31, %v115
      %118 = vrot.lane.b32.xlu0 %v116, 1
      %v119 = vpop.permute.xlu0 %118
      %v121 = vmul.f32 %v103, %v119
      %v122 = vld [vmem:[%s4] sm:$0xf]
      %124 = vrot.lane.b32.xlu0 %v96, 31
      %v125 = vpop.permute.xlu0 %124
      %v127 = vadd.f32 %v112, %v125
      %129 = vrot.lane.b32.xlu0 %v121, 30
      %v130 = vpop.permute.xlu0 %129
      %v132 = vadd.f32 %v127, %v130
      %v133 = vlaneseq
      %v134 = vshrl.u32 %v133, 7
      %v135 = vsub.s32 0, %v134
      %v136 = vrot.slane %v34, %v135
      %138 = vrot.lane.b32.xlu0 %v136, 31
      %v139 = vpop.permute.xlu0 %138
      %v141 = vmul.f32 %v132, %v139
      %143 = vrot.lane.b32.xlu0 %v141, 97
      %v144 = vpop.permute.xlu0 %143
      %v146 = vsel %vm35, %v144, 0.0
      %147 = vadd.xlane.f32.xlu0 %v146
      %v148 = vpop.xlane.xlu0 %147
      %v149 = vmul.f32 %v148, 0.03125
      %v150 = vsub.f32 %v141, %v149
      %v151 = vmul.f32 %v150, %v150
      %153 = vrot.lane.b32.xlu0 %v151, 97
      %v154 = vpop.permute.xlu0 %153
      %v156 = vsel %vm35, %v154, 0.0
      %157 = vadd.xlane.f32.xlu0 %v156
      %v158 = vpop.xlane.xlu0 %157
      %v159 = vmul.f32 %v158, 0.03125
      %v160 = vadd.f32 %v159, 1e-05
      %v161 = vrsqrt.pop %v160
      %v162 = vmul.f32 %v150, %v161
      %164 = vrot.lane.b32.xlu0 %v162, 97
      %v165 = vpop.permute.xlu0 %164
      %v167 = vadd.f32 %v122, %v165
      %168 = vst.msk [vmem:[%s4] sm:$0xf] %vm35, %v167
    $region29: #{mixed_op.1} parent=1 // pred_fallthru
      _
    %s169 = sld [smem:[#allocation3 + $0x3]]
    %p170 = scmp.ne.s32.totalorder %s169, 0
    // Predicated region
    $region30: #{mixed_op.1} parent=1 // pred_check
      %p171 = pneg %p170
    $region31: #{mixed_op.1} parent=1 // pred_check_branch
      %173 = sbr.rel (%p171) target = $region33
    $region32: #{mixed_op.1} parent=1 // pred_region
      %v174 = vld [vmem:[%s4] sm:$0xf]
      %v175 = vld [vmem:[%s1] sm:$0xf]
      %v176 = vadd.f32 %v174, %v175
      %177 = vst.msk [vmem:[%s4] sm:$0xf] %vm35, %v176
    $region33: #{mixed_op.1} parent=1 // pred_fallthru
      _
    %s178 = sld [smem:[#allocation3 + $0x4]]
    %p179 = scmp.ne.s32.totalorder %s178, 0
    %s180 = sld [smem:[#allocation3 + $0x5]]
    %p181 = scmp.ne.s32.totalorder %s180, 0
    %p182 = por %p179, %p181
    // Predicated region
    $region34: #{mixed_op.1} parent=1 // pred_check
      %p183 = pneg %p182
    $region35: #{mixed_op.1} parent=1 // pred_check_branch
      %185 = sbr.rel (%p183) target = $region37
    $region36: #{mixed_op.1} parent=1 // pred_region
      %v186 = vld [vmem:[%s1] sm:$0xf]
      %v187 = vmax.f32 %v186, 0.0
      %vm188 = vcmask 1047808
      %189 = vrot.lane.b32.xlu0 %v187, 32
      %v190 = vpop.permute.xlu0 %189
      %v191 = vsel %vm188, %v190, %v187
      %192 = vrot.lane.b32.xlu0 %v191, 32
      %v193 = vpop.permute.xlu0 %192
      %v194 = vsel %vm188, %v193, %v187
      %v195 = vlaneseq
      %v196 = vshrl.u32 %v195, 7
      %v197 = vsub.s32 0, %v196
      %v198 = vrot.slane %v32, %v197
      %200 = vrot.lane.b32.xlu0 %v198, 30
      %v201 = vpop.permute.xlu0 %200
      %v203 = vmul.f32 %v194, %v201
      %205 = vrot.lane.b32.xlu0 %v203, 98
      %v206 = vpop.permute.xlu0 %205
      %208 = vst.msk [vmem:[#allocation2] sm:$0xf] %vm35, %v206
      %v209 = vlaneseq
      %v210 = vshrl.u32 %v209, 7
      %v211 = vsub.s32 0, %v210
      %v212 = vrot.slane %v30, %v211
      %214 = vrot.lane.b32.xlu0 %v212, 31
      %v215 = vpop.permute.xlu0 %214
      %v217 = vmul.f32 %v194, %v215
      %219 = vrot.lane.b32.xlu0 %v217, 97
      %v220 = vpop.permute.xlu0 %219
      %222 = vst.msk [vmem:[#allocation2 + $0x4] sm:$0xf] %vm35, %v220
      %223 = vst.msk [vmem:[#allocation2 + $0x8] sm:$0xf] %vm35, %v187
      %v224 = vlaneseq
      %v225 = vshrl.u32 %v224, 7
      %v226 = vsub.s32 0, %v225
      %v227 = vrot.slane %v31, %v226
      %229 = vrot.lane.b32.xlu0 %v227, 1
      %v230 = vpop.permute.xlu0 %229
      %v232 = vmul.f32 %v194, %v230
      %234 = vrot.lane.b32.xlu0 %v232, 127
      %v235 = vpop.permute.xlu0 %234
      %237 = vst.msk [vmem:[#allocation2 + $0xc] sm:$0xf] %vm35, %v235
      %v238 = vlaneseq
      %v239 = vshrl.u32 %v238, 7
      %v240 = vsub.s32 0, %v239
      %v241 = vrot.slane %v33, %v240
      %243 = vrot.lane.b32.xlu0 %v241, 2
      %v244 = vpop.permute.xlu0 %243
      %v246 = vmul.f32 %v194, %v244
      %248 = vrot.lane.b32.xlu0 %v246, 126
      %v249 = vpop.permute.xlu0 %248
      %251 = vst.msk [vmem:[#allocation2 + $0x10] sm:$0xf] %vm35, %v249
    $region37: #{mixed_op.1} parent=1 // pred_fallthru
      _
    %p252 = pnand %p179, %p181
    %p253 = pneg %p252
    // Predicated region
    $region38: #{mixed_op.1} parent=1 // pred_check
      _
    $region39: #{mixed_op.1} parent=1 // pred_check_branch
      %255 = sbr.rel (%p252) target = $region41
    $region40: #{mixed_op.1} parent=1 // pred_region
      %v256 = vld [vmem:[%s3] sm:$0xff]
      %v257 = vld [vmem:[#allocation2] sm:$0xff]
      %v258 = vld [vmem:[#allocation2 + $0x8] sm:$0xff]
      %v259 = vld [vmem:[#allocation2 + $0x10] sm:$0xf]
      %vm260 = vcmask 162816
      %v262 = vsel %vm260, %v256, 0
      %vm264 = vcmask 1043456
      %v266 = vsel %vm264, %v259, 0
      %268 = vmatprep.subr.mxu0 0.0
      %269 = vmatpush1.msra.mxu0 %v257
      %270 = vmatprep.subr.mxu0 0.0
      %271 = vmatpush1.msra.mxu0 %v258
      %272 = vmatprep.subr.mxu0 0.0
      %273 = vmatpush1.msra.mxu0 %v266
      %274 = vmatprep.subr.mxu0 0.0
      %275 = vmatpush1.msra.mxu0 0.0
      %276 = vmatprep.subr.mxu0 0.0
      %277 = vmatpush1.msra.mxu0 0.0
      %278 = vmatprep.subr.mxu0 0.0
      %279 = vmatpush1.msra.mxu0 0.0
      %280 = vmatprep.subr.mxu0 0.0
      %281 = vmatpush1.msra.mxu0 0.0
      %282 = vmatprep.subr.mxu0 0.0
      %283 = vmatpush1.msra.mxu0 0.0
      %284 = vmatprep.subr.mxu0 0.0
      %285 = vmatpush1.msra.mxu0 0.0
      %286 = vmatprep.subr.mxu0 0.0
      %287 = vmatpush1.msra.mxu0 0.0
      %288 = vmatprep.subr.mxu0 0.0
      %289 = vmatpush1.msra.mxu0 0.0
      %290 = vmatprep.subr.mxu0 0.0
      %291 = vmatpush1.msra.mxu0 0.0
      %292 = vmatprep.subr.mxu0 0.0
      %293 = vmatpush1.msra.mxu0 0.0
      %294 = vmatprep.subr.mxu0 0.0
      %295 = vmatpush1.msra.mxu0 0.0
      %296 = vmatprep.subr.mxu0 0.0
      %297 = vmatpush1.msra.mxu0 0.0
      %298 = vmatprep.subr.mxu0 0.0
      %299 = vmatpush1.msra.mxu0 0.0
      %300 = vmatprep.subr.mxu0 0.0
      %301 = vmatpush1.msra.mxu0 0.0
      %302 = vmatprep.subr.mxu0 0.0
      %303 = vmatpush1.msra.mxu0 0.0
      %304 = vmatprep.subr.mxu0 0.0
      %305 = vmatpush1.msra.mxu0 0.0
      %306 = vmatprep.subr.mxu0 0.0
      %307 = vmatpush1.msra.mxu0 0.0
      %308 = vmatprep.subr.mxu0 0.0
      %309 = vmatpush1.msra.mxu0 0.0
      %310 = vmatprep.subr.mxu0 0.0
      %311 = vmatpush1.msra.mxu0 0.0
      %312 = vmatprep.subr.mxu0 0.0
      %313 = vmatpush1.msra.mxu0 0.0
      %314 = vmatprep.subr.mxu0 0.0
      %315 = vmatpush1.msra.mxu0 0.0
      %316 = vmatprep.subr.mxu0 0.0
      %317 = vmatpush1.msra.mxu0 0.0
      %318 = vmatprep.subr.mxu0 0.0
      %319 = vmatpush1.msra.mxu0 0.0
      %320 = vmatprep.subr.mxu0 0.0
      %321 = vmatpush1.msra.mxu0 0.0
      %322 = vmatprep.subr.mxu0 0.0
      %323 = vmatpush1.msra.mxu0 0.0
      %324 = vmatprep.subr.mxu0 0.0
      %325 = vmatpush1.msra.mxu0 0.0
      %326 = vmatprep.subr.mxu0 0.0
      %327 = vmatpush1.msra.mxu0 0.0
      %328 = vmatprep.subr.mxu0 0.0
      %329 = vmatpush1.msra.mxu0 0.0
      %330 = vmatprep.subr.mxu0 0.0
      %331 = vmatpush1.msra.mxu0 0.0
      %332 = vmatprep.mubr.f32.mxu0 0.0
      %333 = vmatmul.mubr.f32.gmra.mrb[0].mxu0 %v262
      %v334 = vpop.f32.mrb[0].mxu0
      %v335 = vadd.f32 0.0, %v334
      %v336 = vpop.f32.mrb[0].mxu0
      %337 = vdwg.mxu0
      %v338 = vld [vmem:[%s4] sm:$0xf]
      %v339 = vsel %vm35, %v335, 0.0
      %340 = vadd.xlane.f32.xlu0 %v339
      %v341 = vpop.xlane.xlu0 %340
      %v342 = vmul.f32 %v341, 0.03125
      %v343 = vsub.f32 %v335, %v342
      %v344 = vmul.f32 %v343, %v343
      %v345 = vsel %vm35, %v344, 0.0
      %346 = vadd.xlane.f32.xlu0 %v345
      %v347 = vpop.xlane.xlu0 %346
      %v348 = vmul.f32 %v347, 0.03125
      %v349 = vadd.f32 %v348, 1e-05
      %v350 = vrsqrt.pop %v349
      %v351 = vmul.f32 %v343, %v350
      %vm352 = vcmask 261124
      %v353 = vsel %vm352, %v335, 0.0
      %354 = vadd.xlane.f32.xlu0 %v353
      %v355 = vpop.xlane.xlu0 %354
      %v356 = vmul.f32 %v355, 0.03125
      %v357 = vsub.f32 %v335, %v356
      %v358 = vmul.f32 %v357, %v357
      %v359 = vsel %vm352, %v358, 0.0
      %360 = vadd.xlane.f32.xlu0 %v359
      %v361 = vpop.xlane.xlu0 %360
      %v362 = vmul.f32 %v361, 0.03125
      %v363 = vadd.f32 %v362, 1e-05
      %v364 = vrsqrt.pop %v363
      %v365 = vmul.f32 %v357, %v364
      %v367 = vrot.slane %v365, 4
      %v369 = vadd.f32 %v351, %v367
      %v370 = vadd.f32 %v338, %v369
      %371 = vst.msk [vmem:[%s4] sm:$0xf] %vm35, %v370
    $region41: #{mixed_op.1} parent=1 // pred_fallthru
      _
    %p372 = scmp.eq.s32.totalorder %s180, 0
    %p373 = pnand %p179, %p372
    %p374 = pneg %p373
    // Predicated region
    $region42: #{mixed_op.1} parent=1 // pred_check
      _
    $region43: #{mixed_op.1} parent=1 // pred_check_branch
      %376 = sbr.rel (%p373) target = $region45
    $region44: #{mixed_op.1} parent=1 // pred_region
      %v377 = vld [vmem:[%s3] sm:$0xf]
      %v378 = vld [vmem:[#allocation2] sm:$0xff]
      %v379 = vld [vmem:[#allocation2 + $0x8] sm:$0xff]
      %v380 = vld [vmem:[#allocation2 + $0x10] sm:$0xf]
      %vm381 = vcmask 162816
      %v383 = vsel %vm381, %v377, 0
      %vm385 = vcmask 1043456
      %v387 = vsel %vm385, %v380, 0
      %389 = vmatprep.subr.mxu0 0.0
      %390 = vmatpush1.msra.mxu0 %v378
      %391 = vmatprep.subr.mxu0 0.0
      %392 = vmatpush1.msra.mxu0 %v379
      %393 = vmatprep.subr.mxu0 0.0
      %394 = vmatpush1.msra.mxu0 %v387
      %395 = vmatprep.subr.mxu0 0.0
      %396 = vmatpush1.msra.mxu0 0.0
      %397 = vmatprep.subr.mxu0 0.0
      %398 = vmatpush1.msra.mxu0 0.0
      %399 = vmatprep.subr.mxu0 0.0
      %400 = vmatpush1.msra.mxu0 0.0
      %401 = vmatprep.subr.mxu0 0.0
      %402 = vmatpush1.msra.mxu0 0.0
      %403 = vmatprep.subr.mxu0 0.0
      %404 = vmatpush1.msra.mxu0 0.0
      %405 = vmatprep.subr.mxu0 0.0
      %406 = vmatpush1.msra.mxu0 0.0
      %407 = vmatprep.subr.mxu0 0.0
      %408 = vmatpush1.msra.mxu0 0.0
      %409 = vmatprep.subr.mxu0 0.0
      %410 = vmatpush1.msra.mxu0 0.0
      %411 = vmatprep.subr.mxu0 0.0
      %412 = vmatpush1.msra.mxu0 0.0
      %413 = vmatprep.subr.mxu0 0.0
      %414 = vmatpush1.msra.mxu0 0.0
      %415 = vmatprep.subr.mxu0 0.0
      %416 = vmatpush1.msra.mxu0 0.0
      %417 = vmatprep.subr.mxu0 0.0
      %418 = vmatpush1.msra.mxu0 0.0
      %419 = vmatprep.subr.mxu0 0.0
      %420 = vmatpush1.msra.mxu0 0.0
      %421 = vmatprep.subr.mxu0 0.0
      %422 = vmatpush1.msra.mxu0 0.0
      %423 = vmatprep.subr.mxu0 0.0
      %424 = vmatpush1.msra.mxu0 0.0
      %425 = vmatprep.subr.mxu0 0.0
      %426 = vmatpush1.msra.mxu0 0.0
      %427 = vmatprep.subr.mxu0 0.0
      %428 = vmatpush1.msra.mxu0 0.0
      %429 = vmatprep.subr.mxu0 0.0
      %430 = vmatpush1.msra.mxu0 0.0
      %431 = vmatprep.subr.mxu0 0.0
      %432 = vmatpush1.msra.mxu0 0.0
      %433 = vmatprep.subr.mxu0 0.0
      %434 = vmatpush1.msra.mxu0 0.0
      %435 = vmatprep.subr.mxu0 0.0
      %436 = vmatpush1.msra.mxu0 0.0
      %437 = vmatprep.subr.mxu0 0.0
      %438 = vmatpush1.msra.mxu0 0.0
      %439 = vmatprep.subr.mxu0 0.0
      %440 = vmatpush1.msra.mxu0 0.0
      %441 = vmatprep.subr.mxu0 0.0
      %442 = vmatpush1.msra.mxu0 0.0
      %443 = vmatprep.subr.mxu0 0.0
      %444 = vmatpush1.msra.mxu0 0.0
      %445 = vmatprep.subr.mxu0 0.0
      %446 = vmatpush1.msra.mxu0 0.0
      %447 = vmatprep.subr.mxu0 0.0
      %448 = vmatpush1.msra.mxu0 0.0
      %449 = vmatprep.subr.mxu0 0.0
      %450 = vmatpush1.msra.mxu0 0.0
      %451 = vmatprep.subr.mxu0 0.0
      %452 = vmatpush1.msra.mxu0 0.0
      %453 = vmatprep.mubr.f32.mxu0 0.0
      %454 = vmatmul.mubr.f32.gmra.mrb[0].mxu0 %v383
      %v455 = vpop.f32.mrb[0].mxu0
      %v456 = vadd.f32 0.0, %v455
      %v457 = vpop.f32.mrb[0].mxu0
      %458 = vdwg.mxu0
      %v459 = vld [vmem:[%s4] sm:$0xf]
      %v460 = vsel %vm35, %v456, 0.0
      %461 = vadd.xlane.f32.xlu0 %v460
      %v462 = vpop.xlane.xlu0 %461
      %v463 = vmul.f32 %v462, 0.03125
      %v464 = vsub.f32 %v456, %v463
      %v465 = vmul.f32 %v464, %v464
      %v466 = vsel %vm35, %v465, 0.0
      %467 = vadd.xlane.f32.xlu0 %v466
      %v468 = vpop.xlane.xlu0 %467
      %v469 = vmul.f32 %v468, 0.03125
      %v470 = vadd.f32 %v469, 1e-05
      %v471 = vrsqrt.pop %v470
      %v472 = vmul.f32 %v464, %v471
      %v473 = vadd.f32 %v459, %v472
      %474 = vst.msk [vmem:[%s4] sm:$0xf] %vm35, %v473
    $region45: #{mixed_op.1} parent=1 // pred_fallthru
      _
    %p475 = scmp.eq.s32.totalorder %s178, 0
    %p476 = pnand %p475, %p181
    %p477 = pneg %p476
    // Predicated region
    $region46: #{mixed_op.1} parent=1 // pred_check
      _
    $region47: #{mixed_op.1} parent=1 // pred_check_branch
      %479 = sbr.rel (%p476) target = $region49
    $region48: #{mixed_op.1} parent=1 // pred_region
      %v480 = vld [vmem:[%s3 + $0x4] sm:$0xf]
      %v481 = vld [vmem:[#allocation2] sm:$0xff]
      %v482 = vld [vmem:[#allocation2 + $0x8] sm:$0xff]
      %v483 = vld [vmem:[#allocation2 + $0x10] sm:$0xf]
      %vm484 = vcmask 162816
      %v486 = vsel %vm484, %v480, 0
      %vm488 = vcmask 1043456
      %v490 = vsel %vm488, %v483, 0
      %492 = vmatprep.subr.mxu0 0.0
      %493 = vmatpush1.msra.mxu0 %v481
      %494 = vmatprep.subr.mxu0 0.0
      %495 = vmatpush1.msra.mxu0 %v482
      %496 = vmatprep.subr.mxu0 0.0
      %497 = vmatpush1.msra.mxu0 %v490
      %498 = vmatprep.subr.mxu0 0.0
      %499 = vmatpush1.msra.mxu0 0.0
      %500 = vmatprep.subr.mxu0 0.0
      %501 = vmatpush1.msra.mxu0 0.0
      %502 = vmatprep.subr.mxu0 0.0
      %503 = vmatpush1.msra.mxu0 0.0
      %504 = vmatprep.subr.mxu0 0.0
      %505 = vmatpush1.msra.mxu0 0.0
      %506 = vmatprep.subr.mxu0 0.0
      %507 = vmatpush1.msra.mxu0 0.0
      %508 = vmatprep.subr.mxu0 0.0
      %509 = vmatpush1.msra.mxu0 0.0
      %510 = vmatprep.subr.mxu0 0.0
      %511 = vmatpush1.msra.mxu0 0.0
      %512 = vmatprep.subr.mxu0 0.0
      %513 = vmatpush1.msra.mxu0 0.0
      %514 = vmatprep.subr.mxu0 0.0
      %515 = vmatpush1.msra.mxu0 0.0
      %516 = vmatprep.subr.mxu0 0.0
      %517 = vmatpush1.msra.mxu0 0.0
      %518 = vmatprep.subr.mxu0 0.0
      %519 = vmatpush1.msra.mxu0 0.0
      %520 = vmatprep.subr.mxu0 0.0
      %521 = vmatpush1.msra.mxu0 0.0
      %522 = vmatprep.subr.mxu0 0.0
      %523 = vmatpush1.msra.mxu0 0.0
      %524 = vmatprep.subr.mxu0 0.0
      %525 = vmatpush1.msra.mxu0 0.0
      %526 = vmatprep.subr.mxu0 0.0
      %527 = vmatpush1.msra.mxu0 0.0
      %528 = vmatprep.subr.mxu0 0.0
      %529 = vmatpush1.msra.mxu0 0.0
      %530 = vmatprep.subr.mxu0 0.0
      %531 = vmatpush1.msra.mxu0 0.0
      %532 = vmatprep.subr.mxu0 0.0
      %533 = vmatpush1.msra.mxu0 0.0
      %534 = vmatprep.subr.mxu0 0.0
      %535 = vmatpush1.msra.mxu0 0.0
      %536 = vmatprep.subr.mxu0 0.0
      %537 = vmatpush1.msra.mxu0 0.0
      %538 = vmatprep.subr.mxu0 0.0
      %539 = vmatpush1.msra.mxu0 0.0
      %540 = vmatprep.subr.mxu0 0.0
      %541 = vmatpush1.msra.mxu0 0.0
      %542 = vmatprep.subr.mxu0 0.0
      %543 = vmatpush1.msra.mxu0 0.0
      %544 = vmatprep.subr.mxu0 0.0
      %545 = vmatpush1.msra.mxu0 0.0
      %546 = vmatprep.subr.mxu0 0.0
      %547 = vmatpush1.msra.mxu0 0.0
      %548 = vmatprep.subr.mxu0 0.0
      %549 = vmatpush1.msra.mxu0 0.0
      %550 = vmatprep.subr.mxu0 0.0
      %551 = vmatpush1.msra.mxu0 0.0
      %552 = vmatprep.subr.mxu0 0.0
      %553 = vmatpush1.msra.mxu0 0.0
      %554 = vmatprep.subr.mxu0 0.0
      %555 = vmatpush1.msra.mxu0 0.0
      %556 = vmatprep.mubr.f32.mxu0 0.0
      %557 = vmatmul.mubr.f32.gmra.mrb[0].mxu0 %v486
      %v558 = vpop.f32.mrb[0].mxu0
      %v559 = vadd.f32 0.0, %v558
      %v560 = vpop.f32.mrb[0].mxu0
      %561 = vdwg.mxu0
      %v562 = vld [vmem:[%s4] sm:$0xf]
      %v563 = vsel %vm35, %v559, 0.0
      %564 = vadd.xlane.f32.xlu0 %v563
      %v565 = vpop.xlane.xlu0 %564
      %v566 = vmul.f32 %v565, 0.03125
      %v567 = vsub.f32 %v559, %v566
      %v568 = vmul.f32 %v567, %v567
      %v569 = vsel %vm35, %v568, 0.0
      %570 = vadd.xlane.f32.xlu0 %v569
      %v571 = vpop.xlane.xlu0 %570
      %v572 = vmul.f32 %v571, 0.03125
      %v573 = vadd.f32 %v572, 1e-05
      %v574 = vrsqrt.pop %v573
      %v575 = vmul.f32 %v567, %v574
      %v576 = vadd.f32 %v562, %v575
      %577 = vst.msk [vmem:[%s4] sm:$0xf] %vm35, %v576
    $region49: #{mixed_op.1} parent=1 // pred_fallthru
      _
    // Predicated region
    $region50: #{mixed_op.1} parent=1 // pred_check
      _
    $region51: #{mixed_op.1} parent=1 // pred_check_branch
      %579 = sbr.rel (0) target = $region53
    $region52: #{mixed_op.1} parent=1 // pred_region
      _
    $region53: #{mixed_op.1} parent=1 // pred_fallthru
      _
    // Predicated region
    $region54: #{mixed_op.1} parent=1 // pred_check
      _
    $region55: #{mixed_op.1} parent=1 // pred_check_branch
      %581 = sbr.rel (0) target = $region57
    $region56: #{mixed_op.1} parent=1 // pred_region
      _
    $region57: #{mixed_op.1} parent=1 // pred_fallthru
      _
    %582 = vsyncpa [#allocation4], 1

</llo_original>
